<compile_context>
chip_gen: v5e
topology: v5e:2x2
jax: 0.10.0
libtpu: 0.0.40
codegen_flags: <defaults>
</compile_context>

<pallas_src>
import functools
import math

import jax
import jax.numpy as jnp
from jax.experimental import pallas as pl
from jax.experimental.pallas import tpu as pltpu

_LANES = 128
_SUBLANES = 8
# ~1 MiB per tile buffer.  With input + output each double-buffered the
# pipeline uses ~4 MiB of VMEM — safe on every generation (incl. v7x 64 MiB).
_TARGET_TILE_BYTES = 1 << 20
# Below this the Pallas copy is a guaranteed regression vs XLA's metadata-only
# reshape (one extra full read+write of HBM plus kernel-launch overhead).
_MIN_PALLAS_BYTES = 256 * 1024


def _copy_kernel(x_ref, o_ref):
    # Identity copy of one (tile_rows, 128) tile — the data-movement hot path
    # of a reshape; element order is preserved exactly.
    o_ref[...] = x_ref[...]


def _resolve_shape(shape, total):
    """Resolve a torch-style target shape (single -1 allowed) and validate it."""
    shape = tuple(int(d) for d in shape)
    if sum(1 for d in shape if d == -1) > 1:
        raise ValueError(f"only one -1 allowed in shape, got {shape}")
    known = 1
    for d in shape:
        if d != -1:
            if d < 0:
                raise ValueError(f"invalid dimension {d} in shape {shape}")
            known *= d
    if -1 in shape:
        if known == 0 or total % known != 0:
            raise ValueError(f"cannot reshape {total} elements into {shape}")
        shape = tuple(total // known if d == -1 else d for d in shape)
    if math.prod(shape) != total:
        raise ValueError(f"cannot reshape {total} elements into {shape}")
    return shape


@functools.partial(jax.jit, static_argnames=("shape", "force_pallas"))
def pallas_reshape(x, shape, force_pallas=False):
    """Equivalent of torch.Tensor.reshape(shape); bulk copy done in Pallas."""
    total = x.size
    shape = _resolve_shape(shape, total)

    itemsize = jnp.dtype(x.dtype).itemsize
    nbytes = total * itemsize

    # Fast path: a row-major reshape is metadata-only in XLA.
    # TODO(synk): callers that can donate/alias the input never need the copy.
    if not force_pallas and (total == 0 or nbytes < _MIN_PALLAS_BYTES):
        return jnp.reshape(x, shape)

    packing = max(1, 4 // itemsize)       # sub-32-bit dtypes pack along sublanes
    row_align = _SUBLANES * packing       # 8 (f32) / 16 (bf16) / 32 (int8) rows

    flat = x.reshape(-1)

    # Pad only when required: to whole 128-lane rows, and (for tiny forced
    # inputs) up to the minimum aligned row count.  The common NCHW case
    # (total % 128 == 0, plenty of rows) takes no pad and no trailing slice.
    rows = max(pl.cdiv(total, _LANES), row_align)
    padded_total = rows * _LANES
    needs_pad = padded_total != total
    if needs_pad:
        flat = jnp.pad(flat, (0, padded_total - total))
    slab = flat.reshape(rows, _LANES)

    # Dtype-aware tile: ~1 MiB per buffer, clamped (to a row_align multiple)
    # so a block never exceeds the slab's leading extent.  Any trailing
    # partial block is handled by pl.cdiv + Pallas masking.
    target_rows = max(row_align, _TARGET_TILE_BYTES // (_LANES * itemsize))
    target_rows -= target_rows % row_align
    tile_rows = min(target_rows, rows - rows % row_align)

    grid = (pl.cdiv(rows, tile_rows),)
    out_slab = pl.pallas_call(
        _copy_kernel,
        out_shape=jax.ShapeDtypeStruct((rows, _LANES), x.dtype),
        grid_spec=pltpu.PrefetchScalarGridSpec(
            num_scalar_prefetch=0,
            grid=grid,
            in_specs=[pl.BlockSpec((tile_rows, _LANES), lambda i: (i, 0))],
            out_specs=pl.BlockSpec((tile_rows, _LANES), lambda i: (i, 0)),
        ),
        compiler_params=pltpu.CompilerParams(
            dimension_semantics=("parallel",),
        ),
        cost_estimate=pl.CostEstimate(
            flops=0,
            transcendentals=0,
            bytes_accessed=2 * rows * _LANES * itemsize,
        ),
    )(slab)

    # Shape re-interpretation is free glue; slice only if we actually padded.
    if needs_pad:
        return out_slab.reshape(-1)[:total].reshape(shape)
    return out_slab.reshape(shape)


if __name__ == "__main__":
    key0, key1, key2 = jax.random.split(jax.random.PRNGKey(0), 3)

    # 1) SNGAN-style Reshape on the small NCHW example, forced through the
    #    Pallas copy path so the kernel itself is exercised.
    x_small = jax.random.normal(key0, (2, 4, 16, 16), dtype=jnp.float32)
    tgt_small = (2, 4 * 16 * 16)
    y_small = jax.block_until_ready(
        pallas_reshape(x_small, tgt_small, force_pallas=True)
    )
    ref_small = jnp.reshape(x_small, tgt_small)
    assert y_small.shape == ref_small.shape, (y_small.shape, ref_small.shape)
    assert y_small.dtype == ref_small.dtype, (y_small.dtype, ref_small.dtype)
    assert bool(jnp.all(y_small == ref_small)), "Pallas reshape mismatch (small)"

    # 2) Same small input through the default path (metadata-only fast path),
    #    including -1 resolution.
    y_fast = jax.block_until_ready(pallas_reshape(x_small, (-1, 16)))
    assert bool(jnp.all(y_fast == jnp.reshape(x_small, (-1, 16))))

    # 3) A larger tensor (512 KiB f32) that naturally takes the Pallas path.
    x_big = jax.random.normal(key1, (2, 64, 32, 32), dtype=jnp.float32)
    y_big = jax.block_until_ready(pallas_reshape(x_big, (2, 64 * 32 * 32)))
    assert bool(jnp.all(y_big == jnp.reshape(x_big, (2, 64 * 32 * 32))))

    # 4) Ragged total + bf16 (exercises the pad/slice path and dtype-aware
    #    row alignment), forced through the kernel.
    x_odd = jax.random.normal(key2, (2, 5, 9, 7), dtype=jnp.bfloat16)
    y_odd = jax.block_until_ready(
        pallas_reshape(x_odd, (-1, 7), force_pallas=True)
    )
    assert bool(jnp.all(y_odd == jnp.reshape(x_odd, (-1, 7))))

    print("KERNEL_OK")
</pallas_src>

<mosaic_0001>
module attributes {stable_mosaic.version = 11 : i64} {
  func.func @_copy_kernel(%arg0: i32, %arg1: memref<16x128xf32, #tpu.memory_space<vmem>>, %arg2: memref<16x128xf32, #tpu.memory_space<vmem>>) attributes {dimension_semantics = [#tpu.dimension_semantics<parallel>], iteration_bounds = array<i64: 1>, scalar_prefetch = 0 : i64, scratch_operands = 0 : i64, tpu.core_type = #tpu.core_type<tc>, window_params = [{transform_indices = @transform_0, window_bounds = array<i64: 16, 128>}, {transform_indices = @transform_1, window_bounds = array<i64: 16, 128>}]} {
    %c0 = arith.constant 0 : index
    %c0_0 = arith.constant 0 : index
    %0 = vector.load %arg1[%c0, %c0_0] : memref<16x128xf32, #tpu.memory_space<vmem>>, vector<16x128xf32>
    %c0_1 = arith.constant 0 : index
    %c0_2 = arith.constant 0 : index
    %1 = vector.load %arg2[%c0_1, %c0_2] : memref<16x128xf32, #tpu.memory_space<vmem>>, vector<16x128xf32>
    tpu.vector_store %arg2[%c0_1, %c0_2], %0 {strides = array<i32>} : memref<16x128xf32, #tpu.memory_space<vmem>>, vector<16x128xf32>,
    return
  }
  func.func @transform_0(%arg0: i32) -> (i32, i32) {
    %c0_i32 = arith.constant 0 : i32
    %c0_i32_0 = arith.constant 0 : i32
    return %arg0, %c0_i32 : i32, i32
  }
  func.func @transform_1(%arg0: i32) -> (i32, i32) {
    %c0_i32 = arith.constant 0 : i32
    %c0_i32_0 = arith.constant 0 : i32
    return %arg0, %c0_i32 : i32, i32
  }
}

</mosaic_0001>

<llo_original>
// kernel: pallas_reshape.1
$region0: #{pallas_reshape.1}
  #allocation0 [shape = 'u32[]', space=smem, size = 0x4, offset = 0x4, fixed_abs, tag = 'smem constant byte address 0x4 - core index']
  #allocation1 [shape = 'u32[72,128]{1,0:T(1,128)}', space=vmem, size = 0x9000, scoped, tag = 'internal scratch']
  %s0 = inlined_call_operand.vmem [shape: f32[16,128], index: 0, kind: input, shape index: {}]
  %s1 = inlined_call_operand.vmem [shape: f32[16,128], index: 1, kind: output, shape index: {}]
  %s2 = sld [smem:[#allocation0]]
  $region14: #{pallas_reshape.1} parent=0
    _
  %s4 = ssub.s32 1, %s2
  %s5 = scalar_select 0, %s4, %s2
  // Predicated region
  $region2: #{pallas_reshape.1} parent=0 // pred_check
    _
  $region3: #{pallas_reshape.1} parent=0 // pred_check_branch
    %7 = sbr.rel (0) target = $region5
  $region4: #{pallas_reshape.1} parent=0 // pred_region
    _
  $region5: #{pallas_reshape.1} parent=0 // pred_fallthru
    _
  %v8 = vld [vmem:[%s0] sm:$0xff]
  %v9 = vld [vmem:[%s0 + $0x8] sm:$0xff]
  %10 = vst [vmem:[%s1] sm:$0xff] %v8
  %11 = vst [vmem:[%s1 + $0x8] sm:$0xff] %v9
  // Predicated region
  $region6: #{pallas_reshape.1} parent=0 // pred_check
    _
  $region7: #{pallas_reshape.1} parent=0 // pred_check_branch
    %13 = sbr.rel (0) target = $region9
  $region8: #{pallas_reshape.1} parent=0 // pred_region
    _
  $region9: #{pallas_reshape.1} parent=0 // pred_fallthru
    _
  // Predicated region
  $region10: #{pallas_reshape.1} parent=0 // pred_check
    _
  $region11: #{pallas_reshape.1} parent=0 // pred_check_branch
    %15 = sbr.rel (0) target = $region13
  $region12: #{pallas_reshape.1} parent=0 // pred_region
    _
  $region13: #{pallas_reshape.1} parent=0 // pred_fallthru
    _

</llo_original>
